<compile_context>
chip_gen: v5e
topology: v5e:2x2
jax: 0.10.0
libtpu: 0.0.40
codegen_flags: <defaults>
</compile_context>

<pallas_src>
import functools

import jax
import jax.numpy as jnp
from jax.experimental import pallas as pl
from jax.experimental.pallas import tpu as pltpu

_H = 128      # lane-padded hidden width
_F_IN = 8     # sublane-padded input feature width (real model has 2 features)


def _round_up(n, m):
    return ((n + m - 1) // m) * m


def _mlp_kernel(x_ref,
                w1_ref, b1_ref,
                w2_ref, b2_ref,
                w3_ref, b3_ref,
                w4_ref, b4_ref,
                w5_ref, b5_ref,
                o_ref):
    """One batch tile: (Linear+ReLU) x4 -> Linear; all hidden dims padded to 128."""
    cdt = w1_ref.dtype   # matmul-operand / activation-storage dtype (bf16 default)
    edt = b1_ref.dtype   # epilogue (bias + ReLU) dtype (bf16 default; f32 for v5e)

    def dense_relu(h, w_ref, b_ref):
        # MXU matmul with f32 accumulation; epilogue in edt; store/feed next
        # layer in cdt (producer-side cast keeps the activation slab narrow).
        y = jnp.dot(h, w_ref[...], preferred_element_type=jnp.float32)
        y = jnp.maximum(y.astype(edt) + b_ref[...], 0.0)
        return y.astype(cdt)

    h = x_ref[...].astype(cdt)            # (T, 8)
    h = dense_relu(h, w1_ref, b1_ref)     # (T, 128)  layer 1 on MXU (K=8)
    h = dense_relu(h, w2_ref, b2_ref)     # (T, 128)
    h = dense_relu(h, w3_ref, b3_ref)     # (T, 128)
    h = dense_relu(h, w4_ref, b4_ref)     # (T, 128)

    # Final layer: (T,128) @ (128,1) matvec on the MXU, f32 accumulation.
    y = jnp.dot(h, w5_ref[...], preferred_element_type=jnp.float32) + b5_ref[...]
    o_ref[...] = y.astype(o_ref.dtype)    # (T, 1)


def prepare_params(params, compute_dtype=jnp.bfloat16, epilogue_dtype=None):
    """Pad all hidden dims to 128 lanes / input dim to 8; cast to kernel dtypes.

    Call once and reuse the result across forward calls (keeps the pad/cast ops
    out of the per-forward path).

    params: list of (W_t, b) with W_t shape (f_in, f_out), b shape (1, f_out).
    Returns the flat list of padded arrays in kernel-argument order.
    """
    edt = compute_dtype if epilogue_dtype is None else epilogue_dtype
    (w1, b1), (w2, b2), (w3, b3), (w4, b4), (w5, b5) = params

    def pad2(a, rows, cols, dt):
        return jnp.pad(a, ((0, rows - a.shape[0]),
                           (0, cols - a.shape[1]))).astype(dt)

    return [
        pad2(w1, _F_IN, _H, compute_dtype), pad2(b1, 1, _H, edt),
        pad2(w2, _H, _H, compute_dtype),    pad2(b2, 1, _H, edt),
        pad2(w3, _H, _H, compute_dtype),    pad2(b3, 1, _H, edt),
        pad2(w4, _H, _H, compute_dtype),    pad2(b4, 1, _H, edt),
        pad2(w5, _H, 1, compute_dtype),     b5.reshape(1, 1).astype(jnp.float32),
    ]


def mlp_forward(x, flat_params, *, tile_b=1024):
    """x: (B, 2) float32; flat_params: output of prepare_params. Returns (B, 1) f32."""
    B, f_in = x.shape
    assert f_in == 2, "model expects 2 input features"

    # Pad features 2 -> 8 so layer 1 runs on the MXU (zero w1 rows keep math exact).
    x8 = jnp.pad(x, ((0, 0), (0, _F_IN - f_in)))

    # Batch-tile selection: multiple of 128, large enough to amortize the
    # per-grid-step overhead, but clamped so that once B >= 256 the grid has at
    # least 2 steps ("parallel" then shards tiles across TCs on v7x).
    tile_req = _round_up(max(tile_b, 128), 128)
    b128 = _round_up(B, 128)
    if b128 >= 256:
        tile = min(tile_req, _round_up(-(-b128 // 2), 128))
    else:
        tile = 128
    B_pad = _round_up(b128, tile)
    if B_pad != B:
        x8 = jnp.pad(x8, ((0, B_pad - B), (0, 0)))
    grid = B_pad // tile

    in_specs = [pl.BlockSpec((tile, _F_IN), lambda i: (i, 0))]
    for p in flat_params:
        # Constant across the batch grid (full-array block, fixed index);
        # Pallas does not re-DMA blocks whose index is unchanged.
        in_specs.append(pl.BlockSpec(p.shape, lambda i: (0, 0)))

    out_spec = pl.BlockSpec((tile, 1), lambda i: (i, 0))

    # Advisory cost hint: strongly compute-bound.
    flops = 2 * B_pad * (_F_IN * _H + 3 * _H * _H + _H * 1)
    weight_bytes = sum(int(p.size) * p.dtype.itemsize for p in flat_params)
    bytes_accessed = B_pad * _F_IN * 4 + B_pad * 4 + weight_bytes
    cost = pl.CostEstimate(flops=flops, transcendentals=0,
                           bytes_accessed=bytes_accessed)

    out = pl.pallas_call(
        _mlp_kernel,
        out_shape=jax.ShapeDtypeStruct((B_pad, 1), jnp.float32),
        grid_spec=pltpu.PrefetchScalarGridSpec(
            num_scalar_prefetch=0,
            grid=(grid,),
            in_specs=in_specs,
            out_specs=out_spec,
        ),
        compiler_params=pltpu.CompilerParams(
            dimension_semantics=("parallel",),
            vmem_limit_bytes=32 * 1024 * 1024),
        cost_estimate=cost,
    )(x8, *flat_params)

    return out[:B]  # (B, 1); zero-padded rows are sliced off


def init_params(key):
    """nn.Linear-style init (uniform +/- 1/sqrt(fan_in)); weights stored
    pre-transposed as (f_in, f_out), biases as (1, f_out)."""
    layer_dims = [(2, 64), (64, 128), (128, 64), (64, 32), (32, 1)]
    params = []
    for (f_in, f_out) in layer_dims:
        key, kw, kb = jax.random.split(key, 3)
        bound = 1.0 / (f_in ** 0.5)
        w_t = jax.random.uniform(kw, (f_in, f_out), jnp.float32, -bound, bound)
        b = jax.random.uniform(kb, (1, f_out), jnp.float32, -bound, bound)
        params.append((w_t, b))
    return params


def reference_forward(x, params):
    h = x
    for i, (w, b) in enumerate(params):
        h = jnp.dot(h, w, precision=jax.lax.Precision.HIGHEST) + b
        if i < len(params) - 1:
            h = jnp.maximum(h, 0.0)
    return h


if __name__ == "__main__":
    key = jax.random.PRNGKey(0)
    key, kx = jax.random.split(key)

    B = 16
    x = jax.random.normal(kx, (B, 2), dtype=jnp.float32)
    params = init_params(key)

    ref = reference_forward(x, params)

    fwd = jax.jit(functools.partial(mlp_forward, tile_b=1024))

    # Default path: bf16 matmul operands + bf16 epilogue, f32 accumulation
    # (intentionally deviates from the f32 PyTorch reference; tolerance covers it).
    flat_bf16 = prepare_params(params, compute_dtype=jnp.bfloat16)
    out_bf16 = jax.block_until_ready(fwd(x, flat_bf16))
    assert out_bf16.shape == (B, 1)
    assert jnp.allclose(out_bf16, ref, atol=5e-2, rtol=5e-2), (
        f"bf16 path max err {jnp.max(jnp.abs(out_bf16 - ref))}")

    # Full-precision path (the bit-faithful one; runs the MXU in its slower f32 mode).
    flat_f32 = prepare_params(params, compute_dtype=jnp.float32)
    out_f32 = jax.block_until_ready(fwd(x, flat_f32))
    assert out_f32.shape == (B, 1)
    assert jnp.allclose(out_f32, ref, atol=5e-3, rtol=5e-3), (
        f"f32 path max err {jnp.max(jnp.abs(out_f32 - ref))}")

    print("KERNEL_OK")
</pallas_src>

<mosaic_0001>
module attributes {stable_mosaic.version = 11 : i64} {
  func.func @_mlp_kernel(%arg0: i32, %arg1: memref<128x8xf32, #tpu.memory_space<vmem>>, %arg2: memref<8x128xbf16, #tpu.memory_space<vmem>>, %arg3: memref<1x128xbf16, #tpu.memory_space<vmem>>, %arg4: memref<128x128xbf16, #tpu.memory_space<vmem>>, %arg5: memref<1x128xbf16, #tpu.memory_space<vmem>>, %arg6: memref<128x128xbf16, #tpu.memory_space<vmem>>, %arg7: memref<1x128xbf16, #tpu.memory_space<vmem>>, %arg8: memref<128x128xbf16, #tpu.memory_space<vmem>>, %arg9: memref<1x128xbf16, #tpu.memory_space<vmem>>, %arg10: memref<128x1xbf16, #tpu.memory_space<vmem>>, %arg11: memref<1x1xf32, #tpu.memory_space<vmem>>, %arg12: memref<128x1xf32, #tpu.memory_space<vmem>>) attributes {dimension_semantics = [#tpu.dimension_semantics<parallel>], iteration_bounds = array<i64: 1>, scalar_prefetch = 0 : i64, scratch_operands = 0 : i64, tpu.core_type = #tpu.core_type<tc>, window_params = [{transform_indices = @transform_0, window_bounds = array<i64: 128, 8>}, {pipeline_mode = #tpu.pipeline_mode<synchronous>, transform_indices = @transform_1, window_bounds = array<i64: 8, 128>}, {pipeline_mode = #tpu.pipeline_mode<synchronous>, transform_indices = @transform_2, window_bounds = array<i64: 1, 128>}, {pipeline_mode = #tpu.pipeline_mode<synchronous>, transform_indices = @transform_3, window_bounds = array<i64: 128, 128>}, {pipeline_mode = #tpu.pipeline_mode<synchronous>, transform_indices = @transform_4, window_bounds = array<i64: 1, 128>}, {pipeline_mode = #tpu.pipeline_mode<synchronous>, transform_indices = @transform_5, window_bounds = array<i64: 128, 128>}, {pipeline_mode = #tpu.pipeline_mode<synchronous>, transform_indices = @transform_6, window_bounds = array<i64: 1, 128>}, {pipeline_mode = #tpu.pipeline_mode<synchronous>, transform_indices = @transform_7, window_bounds = array<i64: 128, 128>}, {pipeline_mode = #tpu.pipeline_mode<synchronous>, transform_indices = @transform_8, window_bounds = array<i64: 1, 128>}, {pipeline_mode = #tpu.pipeline_mode<synchronous>, transform_indices = @transform_9, window_bounds = array<i64: 128, 1>}, {pipeline_mode = #tpu.pipeline_mode<synchronous>, transform_indices = @transform_10, window_bounds = array<i64: 1, 1>}, {transform_indices = @transform_11, window_bounds = array<i64: 128, 1>}]} {
    %c0 = arith.constant 0 : index
    %c0_0 = arith.constant 0 : index
    %0 = vector.load %arg1[%c0, %c0_0] : memref<128x8xf32, #tpu.memory_space<vmem>>, vector<128x8xf32>
    %1 = arith.truncf %0 : vector<128x8xf32> to vector<128x8xbf16>
    %c0_1 = arith.constant 0 : index
    %c0_2 = arith.constant 0 : index
    %2 = vector.load %arg2[%c0_1, %c0_2] : memref<8x128xbf16, #tpu.memory_space<vmem>>, vector<8x128xbf16>
    %cst = arith.constant dense<0.000000e+00> : vector<128x128xf32>
    %3 = tpu.matmul %1, %2, %cst {dimension_numbers = #tpu.dot_dimension_numbers<[1], [0], [0], [1], [0, 0, 1, 1], [], []>} : vector<128x8xbf16>, vector<8x128xbf16>, vector<128x128xf32> -> vector<128x128xf32>
    %4 = arith.truncf %3 : vector<128x128xf32> to vector<128x128xbf16>
    %c0_3 = arith.constant 0 : index
    %c0_4 = arith.constant 0 : index
    %5 = vector.load %arg3[%c0_3, %c0_4] : memref<1x128xbf16, #tpu.memory_space<vmem>>, vector<1x128xbf16>
    %6 = vector.broadcast %5 : vector<1x128xbf16> to vector<128x128xbf16>
    %7 = arith.addf %4, %6 : vector<128x128xbf16>
    %cst_5 = arith.constant 0.000000e+00 : bf16
    %8 = vector.broadcast %cst_5 : bf16 to vector<128x128xbf16>
    %9 = arith.maximumf %7, %8 : vector<128x128xbf16>
    %c0_6 = arith.constant 0 : index
    %c0_7 = arith.constant 0 : index
    %10 = vector.load %arg4[%c0_6, %c0_7] : memref<128x128xbf16, #tpu.memory_space<vmem>>, vector<128x128xbf16>
    %cst_8 = arith.constant dense<0.000000e+00> : vector<128x128xf32>
    %11 = tpu.matmul %9, %10, %cst_8 {dimension_numbers = #tpu.dot_dimension_numbers<[1], [0], [0], [1], [0, 0, 1, 1], [], []>} : vector<128x128xbf16>, vector<128x128xbf16>, vector<128x128xf32> -> vector<128x128xf32>
    %12 = arith.truncf %11 : vector<128x128xf32> to vector<128x128xbf16>
    %c0_9 = arith.constant 0 : index
    %c0_10 = arith.constant 0 : index
    %13 = vector.load %arg5[%c0_9, %c0_10] : memref<1x128xbf16, #tpu.memory_space<vmem>>, vector<1x128xbf16>
    %14 = vector.broadcast %13 : vector<1x128xbf16> to vector<128x128xbf16>
    %15 = arith.addf %12, %14 : vector<128x128xbf16>
    %cst_11 = arith.constant 0.000000e+00 : bf16
    %16 = vector.broadcast %cst_11 : bf16 to vector<128x128xbf16>
    %17 = arith.maximumf %15, %16 : vector<128x128xbf16>
    %c0_12 = arith.constant 0 : index
    %c0_13 = arith.constant 0 : index
    %18 = vector.load %arg6[%c0_12, %c0_13] : memref<128x128xbf16, #tpu.memory_space<vmem>>, vector<128x128xbf16>
    %cst_14 = arith.constant dense<0.000000e+00> : vector<128x128xf32>
    %19 = tpu.matmul %17, %18, %cst_14 {dimension_numbers = #tpu.dot_dimension_numbers<[1], [0], [0], [1], [0, 0, 1, 1], [], []>} : vector<128x128xbf16>, vector<128x128xbf16>, vector<128x128xf32> -> vector<128x128xf32>
    %20 = arith.truncf %19 : vector<128x128xf32> to vector<128x128xbf16>
    %c0_15 = arith.constant 0 : index
    %c0_16 = arith.constant 0 : index
    %21 = vector.load %arg7[%c0_15, %c0_16] : memref<1x128xbf16, #tpu.memory_space<vmem>>, vector<1x128xbf16>
    %22 = vector.broadcast %21 : vector<1x128xbf16> to vector<128x128xbf16>
    %23 = arith.addf %20, %22 : vector<128x128xbf16>
    %cst_17 = arith.constant 0.000000e+00 : bf16
    %24 = vector.broadcast %cst_17 : bf16 to vector<128x128xbf16>
    %25 = arith.maximumf %23, %24 : vector<128x128xbf16>
    %c0_18 = arith.constant 0 : index
    %c0_19 = arith.constant 0 : index
    %26 = vector.load %arg8[%c0_18, %c0_19] : memref<128x128xbf16, #tpu.memory_space<vmem>>, vector<128x128xbf16>
    %cst_20 = arith.constant dense<0.000000e+00> : vector<128x128xf32>
    %27 = tpu.matmul %25, %26, %cst_20 {dimension_numbers = #tpu.dot_dimension_numbers<[1], [0], [0], [1], [0, 0, 1, 1], [], []>} : vector<128x128xbf16>, vector<128x128xbf16>, vector<128x128xf32> -> vector<128x128xf32>
    %28 = arith.truncf %27 : vector<128x128xf32> to vector<128x128xbf16>
    %c0_21 = arith.constant 0 : index
    %c0_22 = arith.constant 0 : index
    %29 = vector.load %arg9[%c0_21, %c0_22] : memref<1x128xbf16, #tpu.memory_space<vmem>>, vector<1x128xbf16>
    %30 = vector.broadcast %29 : vector<1x128xbf16> to vector<128x128xbf16>
    %31 = arith.addf %28, %30 : vector<128x128xbf16>
    %cst_23 = arith.constant 0.000000e+00 : bf16
    %32 = vector.broadcast %cst_23 : bf16 to vector<128x128xbf16>
    %33 = arith.maximumf %31, %32 : vector<128x128xbf16>
    %c0_24 = arith.constant 0 : index
    %c0_25 = arith.constant 0 : index
    %34 = vector.load %arg10[%c0_24, %c0_25] : memref<128x1xbf16, #tpu.memory_space<vmem>>, vector<128x1xbf16>
    %cst_26 = arith.constant dense<0.000000e+00> : vector<128x1xf32>
    %35 = tpu.matmul %33, %34, %cst_26 {dimension_numbers = #tpu.dot_dimension_numbers<[1], [0], [0], [1], [0, 0, 1, 1], [], []>} : vector<128x128xbf16>, vector<128x1xbf16>, vector<128x1xf32> -> vector<128x1xf32>
    %c0_27 = arith.constant 0 : index
    %c0_28 = arith.constant 0 : index
    %36 = vector.load %arg11[%c0_27, %c0_28] : memref<1x1xf32, #tpu.memory_space<vmem>>, vector<1x1xf32>
    %37 = vector.broadcast %36 : vector<1x1xf32> to vector<128x1xf32>
    %38 = arith.addf %35, %37 : vector<128x1xf32>
    %c0_29 = arith.constant 0 : index
    %c0_30 = arith.constant 0 : index
    %39 = vector.load %arg12[%c0_29, %c0_30] : memref<128x1xf32, #tpu.memory_space<vmem>>, vector<128x1xf32>
    tpu.vector_store %arg12[%c0_29, %c0_30], %38 {strides = array<i32>} : memref<128x1xf32, #tpu.memory_space<vmem>>, vector<128x1xf32>,
    return
  }
  func.func @transform_0(%arg0: i32) -> (i32, i32) {
    %c0_i32 = arith.constant 0 : i32
    %c0_i32_0 = arith.constant 0 : i32
    return %arg0, %c0_i32 : i32, i32
  }
  func.func @transform_1(%arg0: i32) -> (i32, i32) {
    %c0_i32 = arith.constant 0 : i32
    %c0_i32_0 = arith.constant 0 : i32
    %c0_i32_1 = arith.constant 0 : i32
    return %c0_i32, %c0_i32_0 : i32, i32
  }
  func.func @transform_2(%arg0: i32) -> (i32, i32) {
    %c0_i32 = arith.constant 0 : i32
    %c0_i32_0 = arith.constant 0 : i32
    %c0_i32_1 = arith.constant 0 : i32
    return %c0_i32, %c0_i32_0 : i32, i32
  }
  func.func @transform_3(%arg0: i32) -> (i32, i32) {
    %c0_i32 = arith.constant 0 : i32
    %c0_i32_0 = arith.constant 0 : i32
    %c0_i32_1 = arith.constant 0 : i32
    return %c0_i32, %c0_i32_0 : i32, i32
  }
  func.func @transform_4(%arg0: i32) -> (i32, i32) {
    %c0_i32 = arith.constant 0 : i32
    %c0_i32_0 = arith.constant 0 : i32
    %c0_i32_1 = arith.constant 0 : i32
    return %c0_i32, %c0_i32_0 : i32, i32
  }
  func.func @transform_5(%arg0: i32) -> (i32, i32) {
    %c0_i32 = arith.constant 0 : i32
    %c0_i32_0 = arith.constant 0 : i32
    %c0_i32_1 = arith.constant 0 : i32
    return %c0_i32, %c0_i32_0 : i32, i32
  }
  func.func @transform_6(%arg0: i32) -> (i32, i32) {
    %c0_i32 = arith.constant 0 : i32
    %c0_i32_0 = arith.constant 0 : i32
    %c0_i32_1 = arith.constant 0 : i32
    return %c0_i32, %c0_i32_0 : i32, i32
  }
  func.func @transform_7(%arg0: i32) -> (i32, i32) {
    %c0_i32 = arith.constant 0 : i32
    %c0_i32_0 = arith.constant 0 : i32
    %c0_i32_1 = arith.constant 0 : i32
    return %c0_i32, %c0_i32_0 : i32, i32
  }
  func.func @transform_8(%arg0: i32) -> (i32, i32) {
    %c0_i32 = arith.constant 0 : i32
    %c0_i32_0 = arith.constant 0 : i32
    %c0_i32_1 = arith.constant 0 : i32
    return %c0_i32, %c0_i32_0 : i32, i32
  }
  func.func @transform_9(%arg0: i32) -> (i32, i32) {
    %c0_i32 = arith.constant 0 : i32
    %c0_i32_0 = arith.constant 0 : i32
    %c0_i32_1 = arith.constant 0 : i32
    return %c0_i32, %c0_i32_0 : i32, i32
  }
  func.func @transform_10(%arg0: i32) -> (i32, i32) {
    %c0_i32 = arith.constant 0 : i32
    %c0_i32_0 = arith.constant 0 : i32
    %c0_i32_1 = arith.constant 0 : i32
    return %c0_i32, %c0_i32_0 : i32, i32
  }
  func.func @transform_11(%arg0: i32) -> (i32, i32) {
    %c0_i32 = arith.constant 0 : i32
    %c0_i32_0 = arith.constant 0 : i32
    return %arg0, %c0_i32 : i32, i32
  }
}

</mosaic_0001>

<llo_original>
// kernel: mlp_forward.1
$region0: #{mlp_forward.1}
  #allocation0 [shape = 'u32[]', space=smem, size = 0x4, offset = 0x4, fixed_abs, tag = 'smem constant byte address 0x4 - core index']
  #allocation1 [shape = 'u32[72,128]{1,0:T(1,128)}', space=vmem, size = 0x9000, scoped, tag = 'internal scratch']
  #allocation2 [shape = 'f32[1,1]{1,0:T(1,128)S(1)}', space=vmem, size = 0x200, scoped, tag = 'scoped memory for mlp_forward.1']
  %s0 = inlined_call_operand.vmem [shape: f32[128,8], index: 0, kind: input, shape index: {}]
  %s1 = inlined_call_operand.vmem [shape: bf16[8,128], index: 1, kind: input, shape index: {}]
  %s2 = inlined_call_operand.vmem [shape: bf16[1,128], index: 2, kind: input, shape index: {}]
  %s3 = inlined_call_operand.vmem [shape: bf16[128,128], index: 3, kind: input, shape index: {}]
  %s4 = inlined_call_operand.vmem [shape: bf16[1,128], index: 4, kind: input, shape index: {}]
  %s5 = inlined_call_operand.vmem [shape: bf16[128,128], index: 5, kind: input, shape index: {}]
  %s6 = inlined_call_operand.vmem [shape: bf16[1,128], index: 6, kind: input, shape index: {}]
  %s7 = inlined_call_operand.vmem [shape: bf16[128,128], index: 7, kind: input, shape index: {}]
  %s8 = inlined_call_operand.vmem [shape: bf16[1,128], index: 8, kind: input, shape index: {}]
  %s9 = inlined_call_operand.vmem [shape: bf16[128,1], index: 9, kind: input, shape index: {}]
  %s10 = inlined_call_operand.<no memory space> [shape: f32[1,1], index: 10, kind: input, shape index: {}]
  %s11 = inlined_call_operand.vmem [shape: f32[128,1], index: 11, kind: output, shape index: {}]
  %s12 = sld [smem:[#allocation0]]
  $region54: #{mlp_forward.1} parent=0
    _
  %s14 = ssub.s32 1, %s12
  %s15 = scalar_select 0, %s14, %s12
  %v16 = vstv %s10
  %17 = vst [vmem:[#allocation2] sm:$0x1] %v16
  // Predicated region
  $region2: #{mlp_forward.1} parent=0 // pred_check
    _
  $region3: #{mlp_forward.1} parent=0 // pred_check_branch
    %19 = sbr.rel (0) target = $region5
  $region4: #{mlp_forward.1} parent=0 // pred_region
    _
  $region5: #{mlp_forward.1} parent=0 // pred_fallthru
    _
  // Predicated region
  $region6: #{mlp_forward.1} parent=0 // pred_check
    _
  $region7: #{mlp_forward.1} parent=0 // pred_check_branch
    %21 = sbr.rel (0) target = $region9
  $region8: #{mlp_forward.1} parent=0 // pred_region
    _
  $region9: #{mlp_forward.1} parent=0 // pred_fallthru
    _
  // Predicated region
  $region10: #{mlp_forward.1} parent=0 // pred_check
    _
  $region11: #{mlp_forward.1} parent=0 // pred_check_branch
    %23 = sbr.rel (0) target = $region13
  $region12: #{mlp_forward.1} parent=0 // pred_region
    _
  $region13: #{mlp_forward.1} parent=0 // pred_fallthru
    _
  // Predicated region
  $region14: #{mlp_forward.1} parent=0 // pred_check
    _
  $region15: #{mlp_forward.1} parent=0 // pred_check_branch
    %25 = sbr.rel (0) target = $region17
  $region16: #{mlp_forward.1} parent=0 // pred_region
    _
  $region17: #{mlp_forward.1} parent=0 // pred_fallthru
    _
  // Predicated region
  $region18: #{mlp_forward.1} parent=0 // pred_check
    _
  $region19: #{mlp_forward.1} parent=0 // pred_check_branch
    %27 = sbr.rel (0) target = $region21
  $region20: #{mlp_forward.1} parent=0 // pred_region
    _
  $region21: #{mlp_forward.1} parent=0 // pred_fallthru
    _
  // Predicated region
  $region22: #{mlp_forward.1} parent=0 // pred_check
    _
  $region23: #{mlp_forward.1} parent=0 // pred_check_branch
    %29 = sbr.rel (0) target = $region25
  $region24: #{mlp_forward.1} parent=0 // pred_region
    _
  $region25: #{mlp_forward.1} parent=0 // pred_fallthru
    _
  // Predicated region
  $region26: #{mlp_forward.1} parent=0 // pred_check
    _
  $region27: #{mlp_forward.1} parent=0 // pred_check_branch
    %31 = sbr.rel (0) target = $region29
  $region28: #{mlp_forward.1} parent=0 // pred_region
    _
  $region29: #{mlp_forward.1} parent=0 // pred_fallthru
    _
  // Predicated region
  $region30: #{mlp_forward.1} parent=0 // pred_check
    _
  $region31: #{mlp_forward.1} parent=0 // pred_check_branch
    %33 = sbr.rel (0) target = $region33
  $region32: #{mlp_forward.1} parent=0 // pred_region
    _
  $region33: #{mlp_forward.1} parent=0 // pred_fallthru
    _
  // Predicated region
  $region34: #{mlp_forward.1} parent=0 // pred_check
    _
  $region35: #{mlp_forward.1} parent=0 // pred_check_branch
    %35 = sbr.rel (0) target = $region37
  $region36: #{mlp_forward.1} parent=0 // pred_region
    _
  $region37: #{mlp_forward.1} parent=0 // pred_fallthru
    _
  // Predicated region
  $region38: #{mlp_forward.1} parent=0 // pred_check
    _
  $region39: #{mlp_forward.1} parent=0 // pred_check_branch
    %37 = sbr.rel (0) target = $region41
  $region40: #{mlp_forward.1} parent=0 // pred_region
    _
  $region41: #{mlp_forward.1} parent=0 // pred_fallthru
    _
  // Predicated region
  $region42: #{mlp_forward.1} parent=0 // pred_check
    _
  $region43: #{mlp_forward.1} parent=0 // pred_check_branch
    %39 = sbr.rel (0) target = $region45
  $region44: #{mlp_forward.1} parent=0 // pred_region
    _
  $region45: #{mlp_forward.1} parent=0 // pred_fallthru
    _
  %v41 = vld [vmem:[%s0] sm:$0xff]
  %v42 = vld [vmem:[%s0 + $0x8] sm:$0xff]
  %v43 = vld [vmem:[%s0 + $0x10] sm:$0xff]
  %v44 = vld [vmem:[%s0 + $0x18] sm:$0xff]
  %v45 = vld [vmem:[%s0 + $0x20] sm:$0xff]
  %v46 = vld [vmem:[%s0 + $0x28] sm:$0xff]
  %v47 = vld [vmem:[%s0 + $0x30] sm:$0xff]
  %v48 = vld [vmem:[%s0 + $0x38] sm:$0xff]
  %v49 = vld [vmem:[%s0 + $0x40] sm:$0xff]
  %v50 = vld [vmem:[%s0 + $0x48] sm:$0xff]
  %v51 = vld [vmem:[%s0 + $0x50] sm:$0xff]
  %v52 = vld [vmem:[%s0 + $0x58] sm:$0xff]
  %v53 = vld [vmem:[%s0 + $0x60] sm:$0xff]
  %v54 = vld [vmem:[%s0 + $0x68] sm:$0xff]
  %v55 = vld [vmem:[%s0 + $0x70] sm:$0xff]
  %v56 = vld [vmem:[%s0 + $0x78] sm:$0xff]
  %v57 = vpack.c.bf16 %v42, %v41
  %v58 = vpack.c.bf16 %v44, %v43
  %v59 = vpack.c.bf16 %v46, %v45
  %v60 = vpack.c.bf16 %v48, %v47
  %v61 = vpack.c.bf16 %v50, %v49
  %v62 = vpack.c.bf16 %v52, %v51
  %v63 = vpack.c.bf16 %v54, %v53
  %v64 = vpack.c.bf16 %v56, %v55
  %v65 = vld [vmem:[%s1] sm:$0xf]
  %vm66 = vcmask 64512
  %v68 = vsel %vm66, %v57, 0
  %v71 = vsel %vm66, %v58, 0
  %v74 = vsel %vm66, %v59, 0
  %v77 = vsel %vm66, %v60, 0
  %v80 = vsel %vm66, %v61, 0
  %v83 = vsel %vm66, %v62, 0
  %v86 = vsel %vm66, %v63, 0
  %v89 = vsel %vm66, %v64, 0
  %vm91 = vcmask 1043456
  %v93 = vsel %vm91, %v65, 0
  %95 = vmatpush.bf16.msra.mxu0 0
  %96 = vmatpush.bf16.msra.mxu0 0
  %97 = vmatpush.bf16.msra.mxu0 0
  %98 = vmatpush.bf16.msra.mxu0 0
  %99 = vmatpush.bf16.msra.mxu0 0
  %100 = vmatpush.bf16.msra.mxu0 0
  %101 = vmatpush.bf16.msra.mxu0 0
  %102 = vmatpush.bf16.msra.mxu0 %v93
  %103 = vmatmul.bf16.gmra.mxu0 %v68
  %v104 = vpop.f32.mrf.mxu0
  %v105 = vadd.f32 0.0, %v104
  %v106 = vpop.f32.mrf.mxu0
  %v107 = vadd.f32 0.0, %v106
  %108 = vmatmul.bf16.gmra.mxu0 %v71
  %v109 = vpop.f32.mrf.mxu0
  %v110 = vadd.f32 0.0, %v109
  %v111 = vpop.f32.mrf.mxu0
  %v112 = vadd.f32 0.0, %v111
  %113 = vmatmul.bf16.gmra.mxu0 %v74
  %v114 = vpop.f32.mrf.mxu0
  %v115 = vadd.f32 0.0, %v114
  %v116 = vpop.f32.mrf.mxu0
  %v117 = vadd.f32 0.0, %v116
  %118 = vmatmul.bf16.gmra.mxu0 %v77
  %v119 = vpop.f32.mrf.mxu0
  %v120 = vadd.f32 0.0, %v119
  %v121 = vpop.f32.mrf.mxu0
  %v122 = vadd.f32 0.0, %v121
  %123 = vmatmul.bf16.gmra.mxu0 %v80
  %v124 = vpop.f32.mrf.mxu0
  %v125 = vadd.f32 0.0, %v124
  %v126 = vpop.f32.mrf.mxu0
  %v127 = vadd.f32 0.0, %v126
  %128 = vmatmul.bf16.gmra.mxu0 %v83
  %v129 = vpop.f32.mrf.mxu0
  %v130 = vadd.f32 0.0, %v129
  %v131 = vpop.f32.mrf.mxu0
  %v132 = vadd.f32 0.0, %v131
  %133 = vmatmul.bf16.gmra.mxu0 %v86
  %v134 = vpop.f32.mrf.mxu0
  %v135 = vadd.f32 0.0, %v134
  %v136 = vpop.f32.mrf.mxu0
  %v137 = vadd.f32 0.0, %v136
  %138 = vmatmul.bf16.gmra.mxu0 %v89
  %v139 = vpop.f32.mrf.mxu0
  %v140 = vadd.f32 0.0, %v139
  %v141 = vpop.f32.mrf.mxu0
  %v142 = vadd.f32 0.0, %v141
  %143 = vdwg.mxu0
  %v144 = vpack.c.bf16 %v105, %v105
  %v145 = vpack.c.bf16 %v107, %v107
  %v146 = vpack.c.bf16 %v110, %v110
  %v147 = vpack.c.bf16 %v112, %v112
  %v148 = vpack.c.bf16 %v115, %v115
  %v149 = vpack.c.bf16 %v117, %v117
  %v150 = vpack.c.bf16 %v120, %v120
  %v151 = vpack.c.bf16 %v122, %v122
  %v152 = vpack.c.bf16 %v125, %v125
  %v153 = vpack.c.bf16 %v127, %v127
  %v154 = vpack.c.bf16 %v130, %v130
  %v155 = vpack.c.bf16 %v132, %v132
  %v156 = vpack.c.bf16 %v135, %v135
  %v157 = vpack.c.bf16 %v137, %v137
  %v158 = vpack.c.bf16 %v140, %v140
  %v159 = vpack.c.bf16 %v142, %v142
  %v160 = vld [vmem:[%s2] sm:$0x1]
  %v162 = vpack.i.b16 %v160, %v160
  %v164 = vperm.slane %v162, 0
  %v165 = vunpack.c.l.bf16 %v144
  %v166 = vunpack.c.l.bf16 %v145
  %v167 = vunpack.c.l.bf16 %v146
  %v168 = vunpack.c.l.bf16 %v147
  %v169 = vunpack.c.l.bf16 %v148
  %v170 = vunpack.c.l.bf16 %v149
  %v171 = vunpack.c.l.bf16 %v150
  %v172 = vunpack.c.l.bf16 %v151
  %v173 = vunpack.c.l.bf16 %v152
  %v174 = vunpack.c.l.bf16 %v153
  %v175 = vunpack.c.l.bf16 %v154
  %v176 = vunpack.c.l.bf16 %v155
  %v177 = vunpack.c.l.bf16 %v156
  %v178 = vunpack.c.l.bf16 %v157
  %v179 = vunpack.c.l.bf16 %v158
  %v180 = vunpack.c.l.bf16 %v159
  %v181 = vunpack.c.l.bf16 %v164
  %v182 = vadd.f32 %v165, %v181
  %v183 = vadd.f32 %v166, %v181
  %v184 = vadd.f32 %v167, %v181
  %v185 = vadd.f32 %v168, %v181
  %v186 = vadd.f32 %v169, %v181
  %v187 = vadd.f32 %v170, %v181
  %v188 = vadd.f32 %v171, %v181
  %v189 = vadd.f32 %v172, %v181
  %v190 = vadd.f32 %v173, %v181
  %v191 = vadd.f32 %v174, %v181
  %v192 = vadd.f32 %v175, %v181
  %v193 = vadd.f32 %v176, %v181
  %v194 = vadd.f32 %v177, %v181
  %v195 = vadd.f32 %v178, %v181
  %v196 = vadd.f32 %v179, %v181
  %v197 = vadd.f32 %v180, %v181
  %v198 = vpack.c.bf16 %v182, %v182
  %v199 = vpack.c.bf16 %v183, %v183
  %v200 = vpack.c.bf16 %v184, %v184
  %v201 = vpack.c.bf16 %v185, %v185
  %v202 = vpack.c.bf16 %v186, %v186
  %v203 = vpack.c.bf16 %v187, %v187
  %v204 = vpack.c.bf16 %v188, %v188
  %v205 = vpack.c.bf16 %v189, %v189
  %v206 = vpack.c.bf16 %v190, %v190
  %v207 = vpack.c.bf16 %v191, %v191
  %v208 = vpack.c.bf16 %v192, %v192
  %v209 = vpack.c.bf16 %v193, %v193
  %v210 = vpack.c.bf16 %v194, %v194
  %v211 = vpack.c.bf16 %v195, %v195
  %v212 = vpack.c.bf16 %v196, %v196
  %v213 = vpack.c.bf16 %v197, %v197
  %v214 = vunpack.c.l.bf16 %v198
  %v215 = vunpack.c.l.bf16 %v199
  %v216 = vunpack.c.l.bf16 %v200
  %v217 = vunpack.c.l.bf16 %v201
  %v218 = vunpack.c.l.bf16 %v202
  %v219 = vunpack.c.l.bf16 %v203
  %v220 = vunpack.c.l.bf16 %v204
  %v221 = vunpack.c.l.bf16 %v205
  %v222 = vunpack.c.l.bf16 %v206
  %v223 = vunpack.c.l.bf16 %v207
  %v224 = vunpack.c.l.bf16 %v208
  %v225 = vunpack.c.l.bf16 %v209
  %v226 = vunpack.c.l.bf16 %v210
  %v227 = vunpack.c.l.bf16 %v211
  %v228 = vunpack.c.l.bf16 %v212
  %v229 = vunpack.c.l.bf16 %v213
  %v230 = vmax.f32 %v214, 0.0
  %v231 = vmax.f32 %v215, 0.0
  %v232 = vmax.f32 %v216, 0.0
  %v233 = vmax.f32 %v217, 0.0
  %v234 = vmax.f32 %v218, 0.0
  %v235 = vmax.f32 %v219, 0.0
  %v236 = vmax.f32 %v220, 0.0
  %v237 = vmax.f32 %v221, 0.0
  %v238 = vmax.f32 %v222, 0.0
  %v239 = vmax.f32 %v223, 0.0
  %v240 = vmax.f32 %v224, 0.0
  %v241 = vmax.f32 %v225, 0.0
  %v242 = vmax.f32 %v226, 0.0
  %v243 = vmax.f32 %v227, 0.0
  %v244 = vmax.f32 %v228, 0.0
  %v245 = vmax.f32 %v229, 0.0
  %v246 = vpack.c.bf16 %v231, %v230
  %v247 = vpack.c.bf16 %v233, %v232
  %v248 = vpack.c.bf16 %v235, %v234
  %v249 = vpack.c.bf16 %v237, %v236
  %v250 = vpack.c.bf16 %v239, %v238
  %v251 = vpack.c.bf16 %v241, %v240
  %v252 = vpack.c.bf16 %v243, %v242
  %v253 = vpack.c.bf16 %v245, %v244
  %v254 = vld [vmem:[%s3] sm:$0xf]
  %v255 = vld [vmem:[%s3 + $0x4] sm:$0xf]
  %v256 = vld [vmem:[%s3 + $0x8] sm:$0xf]
  %v257 = vld [vmem:[%s3 + $0xc] sm:$0xf]
  %v258 = vld [vmem:[%s3 + $0x10] sm:$0xf]
  %v259 = vld [vmem:[%s3 + $0x14] sm:$0xf]
  %v260 = vld [vmem:[%s3 + $0x18] sm:$0xf]
  %v261 = vld [vmem:[%s3 + $0x1c] sm:$0xf]
  %v262 = vld [vmem:[%s3 + $0x20] sm:$0xf]
  %v263 = vld [vmem:[%s3 + $0x24] sm:$0xf]
  %v264 = vld [vmem:[%s3 + $0x28] sm:$0xf]
  %v265 = vld [vmem:[%s3 + $0x2c] sm:$0xf]
  %v266 = vld [vmem:[%s3 + $0x30] sm:$0xf]
  %v267 = vld [vmem:[%s3 + $0x34] sm:$0xf]
  %v268 = vld [vmem:[%s3 + $0x38] sm:$0xf]
  %v269 = vld [vmem:[%s3 + $0x3c] sm:$0xf]
  %v286 = vunpack.c.l.b16 %v254
  %v287 = vunpack.c.l.b16 %v255
  %v288 = vunpack.c.l.b16 %v256
  %v289 = vunpack.c.l.b16 %v257
  %v290 = vunpack.c.l.b16 %v258
  %v291 = vunpack.c.l.b16 %v259
  %v292 = vunpack.c.l.b16 %v260
  %v293 = vunpack.c.l.b16 %v261
  %v294 = vunpack.c.l.b16 %v262
  %v295 = vunpack.c.l.b16 %v263
  %v296 = vunpack.c.l.b16 %v264
  %v297 = vunpack.c.l.b16 %v265
  %v298 = vunpack.c.l.b16 %v266
  %v299 = vunpack.c.l.b16 %v267
  %v300 = vunpack.c.l.b16 %v268
  %v301 = vunpack.c.l.b16 %v269
  %v302 = vpack.c.b16 %v287, %v286
  %v303 = vpack.c.b16 %v289, %v288
  %v304 = vpack.c.b16 %v291, %v290
  %v305 = vpack.c.b16 %v293, %v292
  %v306 = vpack.c.b16 %v295, %v294
  %v307 = vpack.c.b16 %v297, %v296
  %v308 = vpack.c.b16 %v299, %v298
  %v309 = vpack.c.b16 %v301, %v300
  %318 = vmatpush.bf16.msra.mxu0 %v309
  %319 = vmatpush.bf16.msra.mxu0 %v308
  %320 = vmatpush.bf16.msra.mxu0 %v307
  %321 = vmatpush.bf16.msra.mxu0 %v306
  %322 = vmatpush.bf16.msra.mxu0 %v305
  %323 = vmatpush.bf16.msra.mxu0 %v304
  %324 = vmatpush.bf16.msra.mxu0 %v303
  %325 = vmatpush.bf16.msra.mxu0 %v302
  %326 = vmatmul.bf16.gmra.mxu0 %v246
  %v327 = vpop.f32.mrf.mxu0
  %v328 = vadd.f32 0.0, %v327
  %v329 = vpop.f32.mrf.mxu0
  %v330 = vadd.f32 0.0, %v329
  %331 = vmatmul.bf16.gmra.mxu0 %v247
  %v332 = vpop.f32.mrf.mxu0
  %v333 = vadd.f32 0.0, %v332
  %v334 = vpop.f32.mrf.mxu0
  %v335 = vadd.f32 0.0, %v334
  %336 = vmatmul.bf16.gmra.mxu0 %v248
  %v337 = vpop.f32.mrf.mxu0
  %v338 = vadd.f32 0.0, %v337
  %v339 = vpop.f32.mrf.mxu0
  %v340 = vadd.f32 0.0, %v339
  %341 = vmatmul.bf16.gmra.mxu0 %v249
  %v342 = vpop.f32.mrf.mxu0
  %v343 = vadd.f32 0.0, %v342
  %v344 = vpop.f32.mrf.mxu0
  %v345 = vadd.f32 0.0, %v344
  %346 = vmatmul.bf16.gmra.mxu0 %v250
  %v347 = vpop.f32.mrf.mxu0
  %v348 = vadd.f32 0.0, %v347
  %v349 = vpop.f32.mrf.mxu0
  %v350 = vadd.f32 0.0, %v349
  %351 = vmatmul.bf16.gmra.mxu0 %v251
  %v352 = vpop.f32.mrf.mxu0
  %v353 = vadd.f32 0.0, %v352
  %v354 = vpop.f32.mrf.mxu0
  %v355 = vadd.f32 0.0, %v354
  %356 = vmatmul.bf16.gmra.mxu0 %v252
  %v357 = vpop.f32.mrf.mxu0
  %v358 = vadd.f32 0.0, %v357
  %v359 = vpop.f32.mrf.mxu0
  %v360 = vadd.f32 0.0, %v359
  %361 = vmatmul.bf16.gmra.mxu0 %v253
  %v362 = vpop.f32.mrf.mxu0
  %v363 = vadd.f32 0.0, %v362
  %v364 = vpop.f32.mrf.mxu0
  %v365 = vadd.f32 0.0, %v364
  %366 = vdwg.mxu0
  %v367 = vpack.c.bf16 %v328, %v328
  %v368 = vpack.c.bf16 %v330, %v330
  %v369 = vpack.c.bf16 %v333, %v333
  %v370 = vpack.c.bf16 %v335, %v335
  %v371 = vpack.c.bf16 %v338, %v338
  %v372 = vpack.c.bf16 %v340, %v340
  %v373 = vpack.c.bf16 %v343, %v343
  %v374 = vpack.c.bf16 %v345, %v345
  %v375 = vpack.c.bf16 %v348, %v348
  %v376 = vpack.c.bf16 %v350, %v350
  %v377 = vpack.c.bf16 %v353, %v353
  %v378 = vpack.c.bf16 %v355, %v355
  %v379 = vpack.c.bf16 %v358, %v358
  %v380 = vpack.c.bf16 %v360, %v360
  %v381 = vpack.c.bf16 %v363, %v363
  %v382 = vpack.c.bf16 %v365, %v365
  %v383 = vld [vmem:[%s4] sm:$0x1]
  %v385 = vpack.i.b16 %v383, %v383
  %v387 = vperm.slane %v385, 0
  %v388 = vunpack.c.l.bf16 %v367
  %v389 = vunpack.c.l.bf16 %v368
  %v390 = vunpack.c.l.bf16 %v369
  %v391 = vunpack.c.l.bf16 %v370
  %v392 = vunpack.c.l.bf16 %v371
  %v393 = vunpack.c.l.bf16 %v372
  %v394 = vunpack.c.l.bf16 %v373
  %v395 = vunpack.c.l.bf16 %v374
  %v396 = vunpack.c.l.bf16 %v375
  %v397 = vunpack.c.l.bf16 %v376
  %v398 = vunpack.c.l.bf16 %v377
  %v399 = vunpack.c.l.bf16 %v378
  %v400 = vunpack.c.l.bf16 %v379
  %v401 = vunpack.c.l.bf16 %v380
  %v402 = vunpack.c.l.bf16 %v381
  %v403 = vunpack.c.l.bf16 %v382
  %v404 = vunpack.c.l.bf16 %v387
  %v405 = vadd.f32 %v388, %v404
  %v406 = vadd.f32 %v389, %v404
  %v407 = vadd.f32 %v390, %v404
  %v408 = vadd.f32 %v391, %v404
  %v409 = vadd.f32 %v392, %v404
  %v410 = vadd.f32 %v393, %v404
  %v411 = vadd.f32 %v394, %v404
  %v412 = vadd.f32 %v395, %v404
  %v413 = vadd.f32 %v396, %v404
  %v414 = vadd.f32 %v397, %v404
  %v415 = vadd.f32 %v398, %v404
  %v416 = vadd.f32 %v399, %v404
  %v417 = vadd.f32 %v400, %v404
  %v418 = vadd.f32 %v401, %v404
  %v419 = vadd.f32 %v402, %v404
  %v420 = vadd.f32 %v403, %v404
  %v421 = vpack.c.bf16 %v405, %v405
  %v422 = vpack.c.bf16 %v406, %v406
  %v423 = vpack.c.bf16 %v407, %v407
  %v424 = vpack.c.bf16 %v408, %v408
  %v425 = vpack.c.bf16 %v409, %v409
  %v426 = vpack.c.bf16 %v410, %v410
  %v427 = vpack.c.bf16 %v411, %v411
  %v428 = vpack.c.bf16 %v412, %v412
  %v429 = vpack.c.bf16 %v413, %v413
  %v430 = vpack.c.bf16 %v414, %v414
  %v431 = vpack.c.bf16 %v415, %v415
  %v432 = vpack.c.bf16 %v416, %v416
  %v433 = vpack.c.bf16 %v417, %v417
  %v434 = vpack.c.bf16 %v418, %v418
  %v435 = vpack.c.bf16 %v419, %v419
  %v436 = vpack.c.bf16 %v420, %v420
  %v437 = vunpack.c.l.bf16 %v421
  %v438 = vunpack.c.l.bf16 %v422
  %v439 = vunpack.c.l.bf16 %v423
  %v440 = vunpack.c.l.bf16 %v424
  %v441 = vunpack.c.l.bf16 %v425
  %v442 = vunpack.c.l.bf16 %v426
  %v443 = vunpack.c.l.bf16 %v427
  %v444 = vunpack.c.l.bf16 %v428
  %v445 = vunpack.c.l.bf16 %v429
  %v446 = vunpack.c.l.bf16 %v430
  %v447 = vunpack.c.l.bf16 %v431
  %v448 = vunpack.c.l.bf16 %v432
  %v449 = vunpack.c.l.bf16 %v433
  %v450 = vunpack.c.l.bf16 %v434
  %v451 = vunpack.c.l.bf16 %v435
  %v452 = vunpack.c.l.bf16 %v436
  %v453 = vmax.f32 %v437, 0.0
  %v454 = vmax.f32 %v438, 0.0
  %v455 = vmax.f32 %v439, 0.0
  %v456 = vmax.f32 %v440, 0.0
  %v457 = vmax.f32 %v441, 0.0
  %v458 = vmax.f32 %v442, 0.0
  %v459 = vmax.f32 %v443, 0.0
  %v460 = vmax.f32 %v444, 0.0
  %v461 = vmax.f32 %v445, 0.0
  %v462 = vmax.f32 %v446, 0.0
  %v463 = vmax.f32 %v447, 0.0
  %v464 = vmax.f32 %v448, 0.0
  %v465 = vmax.f32 %v449, 0.0
  %v466 = vmax.f32 %v450, 0.0
  %v467 = vmax.f32 %v451, 0.0
  %v468 = vmax.f32 %v452, 0.0
  %v469 = vpack.c.bf16 %v454, %v453
  %v470 = vpack.c.bf16 %v456, %v455
  %v471 = vpack.c.bf16 %v458, %v457
  %v472 = vpack.c.bf16 %v460, %v459
  %v473 = vpack.c.bf16 %v462, %v461
  %v474 = vpack.c.bf16 %v464, %v463
  %v475 = vpack.c.bf16 %v466, %v465
  %v476 = vpack.c.bf16 %v468, %v467
  %v477 = vld [vmem:[%s5] sm:$0xf]
  %v478 = vld [vmem:[%s5 + $0x4] sm:$0xf]
  %v479 = vld [vmem:[%s5 + $0x8] sm:$0xf]
  %v480 = vld [vmem:[%s5 + $0xc] sm:$0xf]
  %v481 = vld [vmem:[%s5 + $0x10] sm:$0xf]
  %v482 = vld [vmem:[%s5 + $0x14] sm:$0xf]
  %v483 = vld [vmem:[%s5 + $0x18] sm:$0xf]
  %v484 = vld [vmem:[%s5 + $0x1c] sm:$0xf]
  %v485 = vld [vmem:[%s5 + $0x20] sm:$0xf]
  %v486 = vld [vmem:[%s5 + $0x24] sm:$0xf]
  %v487 = vld [vmem:[%s5 + $0x28] sm:$0xf]
  %v488 = vld [vmem:[%s5 + $0x2c] sm:$0xf]
  %v489 = vld [vmem:[%s5 + $0x30] sm:$0xf]
  %v490 = vld [vmem:[%s5 + $0x34] sm:$0xf]
  %v491 = vld [vmem:[%s5 + $0x38] sm:$0xf]
  %v492 = vld [vmem:[%s5 + $0x3c] sm:$0xf]
  %v509 = vunpack.c.l.b16 %v477
  %v510 = vunpack.c.l.b16 %v478
  %v511 = vunpack.c.l.b16 %v479
  %v512 = vunpack.c.l.b16 %v480
  %v513 = vunpack.c.l.b16 %v481
  %v514 = vunpack.c.l.b16 %v482
  %v515 = vunpack.c.l.b16 %v483
  %v516 = vunpack.c.l.b16 %v484
  %v517 = vunpack.c.l.b16 %v485
  %v518 = vunpack.c.l.b16 %v486
  %v519 = vunpack.c.l.b16 %v487
  %v520 = vunpack.c.l.b16 %v488
  %v521 = vunpack.c.l.b16 %v489
  %v522 = vunpack.c.l.b16 %v490
  %v523 = vunpack.c.l.b16 %v491
  %v524 = vunpack.c.l.b16 %v492
  %v525 = vpack.c.b16 %v510, %v509
  %v526 = vpack.c.b16 %v512, %v511
  %v527 = vpack.c.b16 %v514, %v513
  %v528 = vpack.c.b16 %v516, %v515
  %v529 = vpack.c.b16 %v518, %v517
  %v530 = vpack.c.b16 %v520, %v519
  %v531 = vpack.c.b16 %v522, %v521
  %v532 = vpack.c.b16 %v524, %v523
  %541 = vmatpush.bf16.msra.mxu0 %v532
  %542 = vmatpush.bf16.msra.mxu0 %v531
  %543 = vmatpush.bf16.msra.mxu0 %v530
  %544 = vmatpush.bf16.msra.mxu0 %v529
  %545 = vmatpush.bf16.msra.mxu0 %v528
  %546 = vmatpush.bf16.msra.mxu0 %v527
  %547 = vmatpush.bf16.msra.mxu0 %v526
  %548 = vmatpush.bf16.msra.mxu0 %v525
  %549 = vmatmul.bf16.gmra.mxu0 %v469
  %v550 = vpop.f32.mrf.mxu0
  %v551 = vadd.f32 0.0, %v550
  %v552 = vpop.f32.mrf.mxu0
  %v553 = vadd.f32 0.0, %v552
  %554 = vmatmul.bf16.gmra.mxu0 %v470
  %v555 = vpop.f32.mrf.mxu0
  %v556 = vadd.f32 0.0, %v555
  %v557 = vpop.f32.mrf.mxu0
  %v558 = vadd.f32 0.0, %v557
  %559 = vmatmul.bf16.gmra.mxu0 %v471
  %v560 = vpop.f32.mrf.mxu0
  %v561 = vadd.f32 0.0, %v560
  %v562 = vpop.f32.mrf.mxu0
  %v563 = vadd.f32 0.0, %v562
  %564 = vmatmul.bf16.gmra.mxu0 %v472
  %v565 = vpop.f32.mrf.mxu0
  %v566 = vadd.f32 0.0, %v565
  %v567 = vpop.f32.mrf.mxu0
  %v568 = vadd.f32 0.0, %v567
  %569 = vmatmul.bf16.gmra.mxu0 %v473
  %v570 = vpop.f32.mrf.mxu0
  %v571 = vadd.f32 0.0, %v570
  %v572 = vpop.f32.mrf.mxu0
  %v573 = vadd.f32 0.0, %v572
  %574 = vmatmul.bf16.gmra.mxu0 %v474
  %v575 = vpop.f32.mrf.mxu0
  %v576 = vadd.f32 0.0, %v575
  %v577 = vpop.f32.mrf.mxu0
  %v578 = vadd.f32 0.0, %v577
  %579 = vmatmul.bf16.gmra.mxu0 %v475
  %v580 = vpop.f32.mrf.mxu0
  %v581 = vadd.f32 0.0, %v580
  %v582 = vpop.f32.mrf.mxu0
  %v583 = vadd.f32 0.0, %v582
  %584 = vmatmul.bf16.gmra.mxu0 %v476
  %v585 = vpop.f32.mrf.mxu0
  %v586 = vadd.f32 0.0, %v585
  %v587 = vpop.f32.mrf.mxu0
  %v588 = vadd.f32 0.0, %v587
  %589 = vdwg.mxu0
  %v590 = vpack.c.bf16 %v551, %v551
  %v591 = vpack.c.bf16 %v553, %v553
  %v592 = vpack.c.bf16 %v556, %v556
  %v593 = vpack.c.bf16 %v558, %v558
  %v594 = vpack.c.bf16 %v561, %v561
  %v595 = vpack.c.bf16 %v563, %v563
  %v596 = vpack.c.bf16 %v566, %v566
  %v597 = vpack.c.bf16 %v568, %v568
  %v598 = vpack.c.bf16 %v571, %v571
  %v599 = vpack.c.bf16 %v573, %v573
  %v600 = vpack.c.bf16 %v576, %v576
  %v601 = vpack.c.bf16 %v578, %v578
  %v602 = vpack.c.bf16 %v581, %v581
  %v603 = vpack.c.bf16 %v583, %v583
  %v604 = vpack.c.bf16 %v586, %v586
  %v605 = vpack.c.bf16 %v588, %v588
  %v606 = vld [vmem:[%s6] sm:$0x1]
  %v608 = vpack.i.b16 %v606, %v606
  %v610 = vperm.slane %v608, 0
  %v611 = vunpack.c.l.bf16 %v590
  %v612 = vunpack.c.l.bf16 %v591
  %v613 = vunpack.c.l.bf16 %v592
  %v614 = vunpack.c.l.bf16 %v593
  %v615 = vunpack.c.l.bf16 %v594
  %v616 = vunpack.c.l.bf16 %v595
  %v617 = vunpack.c.l.bf16 %v596
  %v618 = vunpack.c.l.bf16 %v597
  %v619 = vunpack.c.l.bf16 %v598
  %v620 = vunpack.c.l.bf16 %v599
  %v621 = vunpack.c.l.bf16 %v600
  %v622 = vunpack.c.l.bf16 %v601
  %v623 = vunpack.c.l.bf16 %v602
  %v624 = vunpack.c.l.bf16 %v603
  %v625 = vunpack.c.l.bf16 %v604
  %v626 = vunpack.c.l.bf16 %v605
  %v627 = vunpack.c.l.bf16 %v610
  %v628 = vadd.f32 %v611, %v627
  %v629 = vadd.f32 %v612, %v627
  %v630 = vadd.f32 %v613, %v627
  %v631 = vadd.f32 %v614, %v627
  %v632 = vadd.f32 %v615, %v627
  %v633 = vadd.f32 %v616, %v627
  %v634 = vadd.f32 %v617, %v627
  %v635 = vadd.f32 %v618, %v627
  %v636 = vadd.f32 %v619, %v627
  %v637 = vadd.f32 %v620, %v627
  %v638 = vadd.f32 %v621, %v627
  %v639 = vadd.f32 %v622, %v627
  %v640 = vadd.f32 %v623, %v627
  %v641 = vadd.f32 %v624, %v627
  %v642 = vadd.f32 %v625, %v627
  %v643 = vadd.f32 %v626, %v627
  %v644 = vpack.c.bf16 %v628, %v628
  %v645 = vpack.c.bf16 %v629, %v629
  %v646 = vpack.c.bf16 %v630, %v630
  %v647 = vpack.c.bf16 %v631, %v631
  %v648 = vpack.c.bf16 %v632, %v632
  %v649 = vpack.c.bf16 %v633, %v633
  %v650 = vpack.c.bf16 %v634, %v634
  %v651 = vpack.c.bf16 %v635, %v635
  %v652 = vpack.c.bf16 %v636, %v636
  %v653 = vpack.c.bf16 %v637, %v637
  %v654 = vpack.c.bf16 %v638, %v638
  %v655 = vpack.c.bf16 %v639, %v639
  %v656 = vpack.c.bf16 %v640, %v640
  %v657 = vpack.c.bf16 %v641, %v641
  %v658 = vpack.c.bf16 %v642, %v642
  %v659 = vpack.c.bf16 %v643, %v643
  %v660 = vunpack.c.l.bf16 %v644
  %v661 = vunpack.c.l.bf16 %v645
  %v662 = vunpack.c.l.bf16 %v646
  %v663 = vunpack.c.l.bf16 %v647
  %v664 = vunpack.c.l.bf16 %v648
  %v665 = vunpack.c.l.bf16 %v649
  %v666 = vunpack.c.l.bf16 %v650
  %v667 = vunpack.c.l.bf16 %v651
  %v668 = vunpack.c.l.bf16 %v652
  %v669 = vunpack.c.l.bf16 %v653
  %v670 = vunpack.c.l.bf16 %v654
  %v671 = vunpack.c.l.bf16 %v655
  %v672 = vunpack.c.l.bf16 %v656
  %v673 = vunpack.c.l.bf16 %v657
  %v674 = vunpack.c.l.bf16 %v658
  %v675 = vunpack.c.l.bf16 %v659
  %v676 = vmax.f32 %v660, 0.0
  %v677 = vmax.f32 %v661, 0.0
  %v678 = vmax.f32 %v662, 0.0
  %v679 = vmax.f32 %v663, 0.0
  %v680 = vmax.f32 %v664, 0.0
  %v681 = vmax.f32 %v665, 0.0
  %v682 = vmax.f32 %v666, 0.0
  %v683 = vmax.f32 %v667, 0.0
  %v684 = vmax.f32 %v668, 0.0
  %v685 = vmax.f32 %v669, 0.0
  %v686 = vmax.f32 %v670, 0.0
  %v687 = vmax.f32 %v671, 0.0
  %v688 = vmax.f32 %v672, 0.0
  %v689 = vmax.f32 %v673, 0.0
  %v690 = vmax.f32 %v674, 0.0
  %v691 = vmax.f32 %v675, 0.0
  %v692 = vpack.c.bf16 %v677, %v676
  %v693 = vpack.c.bf16 %v679, %v678
  %v694 = vpack.c.bf16 %v681, %v680
  %v695 = vpack.c.bf16 %v683, %v682
  %v696 = vpack.c.bf16 %v685, %v684
  %v697 = vpack.c.bf16 %v687, %v686
  %v698 = vpack.c.bf16 %v689, %v688
  %v699 = vpack.c.bf16 %v691, %v690
  %v700 = vld [vmem:[%s7] sm:$0xf]
  %v701 = vld [vmem:[%s7 + $0x4] sm:$0xf]
  %v702 = vld [vmem:[%s7 + $0x8] sm:$0xf]
  %v703 = vld [vmem:[%s7 + $0xc] sm:$0xf]
  %v704 = vld [vmem:[%s7 + $0x10] sm:$0xf]
  %v705 = vld [vmem:[%s7 + $0x14] sm:$0xf]
  %v706 = vld [vmem:[%s7 + $0x18] sm:$0xf]
  %v707 = vld [vmem:[%s7 + $0x1c] sm:$0xf]
  %v708 = vld [vmem:[%s7 + $0x20] sm:$0xf]
  %v709 = vld [vmem:[%s7 + $0x24] sm:$0xf]
  %v710 = vld [vmem:[%s7 + $0x28] sm:$0xf]
  %v711 = vld [vmem:[%s7 + $0x2c] sm:$0xf]
  %v712 = vld [vmem:[%s7 + $0x30] sm:$0xf]
  %v713 = vld [vmem:[%s7 + $0x34] sm:$0xf]
  %v714 = vld [vmem:[%s7 + $0x38] sm:$0xf]
  %v715 = vld [vmem:[%s7 + $0x3c] sm:$0xf]
  %v732 = vunpack.c.l.b16 %v700
  %v733 = vunpack.c.l.b16 %v701
  %v734 = vunpack.c.l.b16 %v702
  %v735 = vunpack.c.l.b16 %v703
  %v736 = vunpack.c.l.b16 %v704
  %v737 = vunpack.c.l.b16 %v705
  %v738 = vunpack.c.l.b16 %v706
  %v739 = vunpack.c.l.b16 %v707
  %v740 = vunpack.c.l.b16 %v708
  %v741 = vunpack.c.l.b16 %v709
  %v742 = vunpack.c.l.b16 %v710
  %v743 = vunpack.c.l.b16 %v711
  %v744 = vunpack.c.l.b16 %v712
  %v745 = vunpack.c.l.b16 %v713
  %v746 = vunpack.c.l.b16 %v714
  %v747 = vunpack.c.l.b16 %v715
  %v748 = vpack.c.b16 %v733, %v732
  %v749 = vpack.c.b16 %v735, %v734
  %v750 = vpack.c.b16 %v737, %v736
  %v751 = vpack.c.b16 %v739, %v738
  %v752 = vpack.c.b16 %v741, %v740
  %v753 = vpack.c.b16 %v743, %v742
  %v754 = vpack.c.b16 %v745, %v744
  %v755 = vpack.c.b16 %v747, %v746
  %764 = vmatpush.bf16.msra.mxu0 %v755
  %765 = vmatpush.bf16.msra.mxu0 %v754
  %766 = vmatpush.bf16.msra.mxu0 %v753
  %767 = vmatpush.bf16.msra.mxu0 %v752
  %768 = vmatpush.bf16.msra.mxu0 %v751
  %769 = vmatpush.bf16.msra.mxu0 %v750
  %770 = vmatpush.bf16.msra.mxu0 %v749
  %771 = vmatpush.bf16.msra.mxu0 %v748
  %772 = vmatmul.bf16.gmra.mxu0 %v692
  %v773 = vpop.f32.mrf.mxu0
  %v774 = vadd.f32 0.0, %v773
  %v775 = vpop.f32.mrf.mxu0
  %v776 = vadd.f32 0.0, %v775
  %777 = vmatmul.bf16.gmra.mxu0 %v693
  %v778 = vpop.f32.mrf.mxu0
  %v779 = vadd.f32 0.0, %v778
  %v780 = vpop.f32.mrf.mxu0
  %v781 = vadd.f32 0.0, %v780
  %782 = vmatmul.bf16.gmra.mxu0 %v694
  %v783 = vpop.f32.mrf.mxu0
  %v784 = vadd.f32 0.0, %v783
  %v785 = vpop.f32.mrf.mxu0
  %v786 = vadd.f32 0.0, %v785
  %787 = vmatmul.bf16.gmra.mxu0 %v695
  %v788 = vpop.f32.mrf.mxu0
  %v789 = vadd.f32 0.0, %v788
  %v790 = vpop.f32.mrf.mxu0
  %v791 = vadd.f32 0.0, %v790
  %792 = vmatmul.bf16.gmra.mxu0 %v696
  %v793 = vpop.f32.mrf.mxu0
  %v794 = vadd.f32 0.0, %v793
  %v795 = vpop.f32.mrf.mxu0
  %v796 = vadd.f32 0.0, %v795
  %797 = vmatmul.bf16.gmra.mxu0 %v697
  %v798 = vpop.f32.mrf.mxu0
  %v799 = vadd.f32 0.0, %v798
  %v800 = vpop.f32.mrf.mxu0
  %v801 = vadd.f32 0.0, %v800
  %802 = vmatmul.bf16.gmra.mxu0 %v698
  %v803 = vpop.f32.mrf.mxu0
  %v804 = vadd.f32 0.0, %v803
  %v805 = vpop.f32.mrf.mxu0
  %v806 = vadd.f32 0.0, %v805
  %807 = vmatmul.bf16.gmra.mxu0 %v699
  %v808 = vpop.f32.mrf.mxu0
  %v809 = vadd.f32 0.0, %v808
  %v810 = vpop.f32.mrf.mxu0
  %v811 = vadd.f32 0.0, %v810
  %812 = vdwg.mxu0
  %v813 = vpack.c.bf16 %v774, %v774
  %v814 = vpack.c.bf16 %v776, %v776
  %v815 = vpack.c.bf16 %v779, %v779
  %v816 = vpack.c.bf16 %v781, %v781
  %v817 = vpack.c.bf16 %v784, %v784
  %v818 = vpack.c.bf16 %v786, %v786
  %v819 = vpack.c.bf16 %v789, %v789
  %v820 = vpack.c.bf16 %v791, %v791
  %v821 = vpack.c.bf16 %v794, %v794
  %v822 = vpack.c.bf16 %v796, %v796
  %v823 = vpack.c.bf16 %v799, %v799
  %v824 = vpack.c.bf16 %v801, %v801
  %v825 = vpack.c.bf16 %v804, %v804
  %v826 = vpack.c.bf16 %v806, %v806
  %v827 = vpack.c.bf16 %v809, %v809
  %v828 = vpack.c.bf16 %v811, %v811
  %v829 = vld [vmem:[%s8] sm:$0x1]
  %v831 = vpack.i.b16 %v829, %v829
  %v833 = vperm.slane %v831, 0
  %v834 = vunpack.c.l.bf16 %v813
  %v835 = vunpack.c.l.bf16 %v814
  %v836 = vunpack.c.l.bf16 %v815
  %v837 = vunpack.c.l.bf16 %v816
  %v838 = vunpack.c.l.bf16 %v817
  %v839 = vunpack.c.l.bf16 %v818
  %v840 = vunpack.c.l.bf16 %v819
  %v841 = vunpack.c.l.bf16 %v820
  %v842 = vunpack.c.l.bf16 %v821
  %v843 = vunpack.c.l.bf16 %v822
  %v844 = vunpack.c.l.bf16 %v823
  %v845 = vunpack.c.l.bf16 %v824
  %v846 = vunpack.c.l.bf16 %v825
  %v847 = vunpack.c.l.bf16 %v826
  %v848 = vunpack.c.l.bf16 %v827
  %v849 = vunpack.c.l.bf16 %v828
  %v850 = vunpack.c.l.bf16 %v833
  %v851 = vadd.f32 %v834, %v850
  %v852 = vadd.f32 %v835, %v850
  %v853 = vadd.f32 %v836, %v850
  %v854 = vadd.f32 %v837, %v850
  %v855 = vadd.f32 %v838, %v850
  %v856 = vadd.f32 %v839, %v850
  %v857 = vadd.f32 %v840, %v850
  %v858 = vadd.f32 %v841, %v850
  %v859 = vadd.f32 %v842, %v850
  %v860 = vadd.f32 %v843, %v850
  %v861 = vadd.f32 %v844, %v850
  %v862 = vadd.f32 %v845, %v850
  %v863 = vadd.f32 %v846, %v850
  %v864 = vadd.f32 %v847, %v850
  %v865 = vadd.f32 %v848, %v850
  %v866 = vadd.f32 %v849, %v850
  %v867 = vpack.c.bf16 %v851, %v851
  %v868 = vpack.c.bf16 %v852, %v852
  %v869 = vpack.c.bf16 %v853, %v853
  %v870 = vpack.c.bf16 %v854, %v854
  %v871 = vpack.c.bf16 %v855, %v855
  %v872 = vpack.c.bf16 %v856, %v856
  %v873 = vpack.c.bf16 %v857, %v857
  %v874 = vpack.c.bf16 %v858, %v858
  %v875 = vpack.c.bf16 %v859, %v859
  %v876 = vpack.c.bf16 %v860, %v860
  %v877 = vpack.c.bf16 %v861, %v861
  %v878 = vpack.c.bf16 %v862, %v862
  %v879 = vpack.c.bf16 %v863, %v863
  %v880 = vpack.c.bf16 %v864, %v864
  %v881 = vpack.c.bf16 %v865, %v865
  %v882 = vpack.c.bf16 %v866, %v866
  %v883 = vunpack.c.l.bf16 %v867
  %v884 = vunpack.c.l.bf16 %v868
  %v885 = vunpack.c.l.bf16 %v869
  %v886 = vunpack.c.l.bf16 %v870
  %v887 = vunpack.c.l.bf16 %v871
  %v888 = vunpack.c.l.bf16 %v872
  %v889 = vunpack.c.l.bf16 %v873
  %v890 = vunpack.c.l.bf16 %v874
  %v891 = vunpack.c.l.bf16 %v875
  %v892 = vunpack.c.l.bf16 %v876
  %v893 = vunpack.c.l.bf16 %v877
  %v894 = vunpack.c.l.bf16 %v878
  %v895 = vunpack.c.l.bf16 %v879
  %v896 = vunpack.c.l.bf16 %v880
  %v897 = vunpack.c.l.bf16 %v881
  %v898 = vunpack.c.l.bf16 %v882
  %v899 = vmax.f32 %v883, 0.0
  %v900 = vmax.f32 %v884, 0.0
  %v901 = vmax.f32 %v885, 0.0
  %v902 = vmax.f32 %v886, 0.0
  %v903 = vmax.f32 %v887, 0.0
  %v904 = vmax.f32 %v888, 0.0
  %v905 = vmax.f32 %v889, 0.0
  %v906 = vmax.f32 %v890, 0.0
  %v907 = vmax.f32 %v891, 0.0
  %v908 = vmax.f32 %v892, 0.0
  %v909 = vmax.f32 %v893, 0.0
  %v910 = vmax.f32 %v894, 0.0
  %v911 = vmax.f32 %v895, 0.0
  %v912 = vmax.f32 %v896, 0.0
  %v913 = vmax.f32 %v897, 0.0
  %v914 = vmax.f32 %v898, 0.0
  %v915 = vpack.c.bf16 %v900, %v899
  %v916 = vpack.c.bf16 %v902, %v901
  %v917 = vpack.c.bf16 %v904, %v903
  %v918 = vpack.c.bf16 %v906, %v905
  %v919 = vpack.c.bf16 %v908, %v907
  %v920 = vpack.c.bf16 %v910, %v909
  %v921 = vpack.c.bf16 %v912, %v911
  %v922 = vpack.c.bf16 %v914, %v913
  %v923 = vld [vmem:[%s9] sm:$0xf]
  %v924 = vld [vmem:[%s9 + $0x4] sm:$0xf]
  %v925 = vld [vmem:[%s9 + $0x8] sm:$0xf]
  %v926 = vld [vmem:[%s9 + $0xc] sm:$0xf]
  %v927 = vld [vmem:[%s9 + $0x10] sm:$0xf]
  %v928 = vld [vmem:[%s9 + $0x14] sm:$0xf]
  %v929 = vld [vmem:[%s9 + $0x18] sm:$0xf]
  %v930 = vld [vmem:[%s9 + $0x1c] sm:$0xf]
  %v931 = vld [vmem:[%s9 + $0x20] sm:$0xf]
  %v932 = vld [vmem:[%s9 + $0x24] sm:$0xf]
  %v933 = vld [vmem:[%s9 + $0x28] sm:$0xf]
  %v934 = vld [vmem:[%s9 + $0x2c] sm:$0xf]
  %v935 = vld [vmem:[%s9 + $0x30] sm:$0xf]
  %v936 = vld [vmem:[%s9 + $0x34] sm:$0xf]
  %v937 = vld [vmem:[%s9 + $0x38] sm:$0xf]
  %v938 = vld [vmem:[%s9 + $0x3c] sm:$0xf]
  %v939 = vld [vmem:[#allocation2] sm:$0x1]
  %v941 = vperm.slane %v939, 0
  %v959 = vunpack.c.l.b16 %v923
  %v960 = vunpack.c.l.b16 %v924
  %v961 = vunpack.c.l.b16 %v925
  %v962 = vunpack.c.l.b16 %v926
  %v963 = vunpack.c.l.b16 %v927
  %v964 = vunpack.c.l.b16 %v928
  %v965 = vunpack.c.l.b16 %v929
  %v966 = vunpack.c.l.b16 %v930
  %v967 = vunpack.c.l.b16 %v931
  %v968 = vunpack.c.l.b16 %v932
  %v969 = vunpack.c.l.b16 %v933
  %v970 = vunpack.c.l.b16 %v934
  %v971 = vunpack.c.l.b16 %v935
  %v972 = vunpack.c.l.b16 %v936
  %v973 = vunpack.c.l.b16 %v937
  %v974 = vunpack.c.l.b16 %v938
  %v975 = vpack.c.b16 %v960, %v959
  %v976 = vpack.c.b16 %v962, %v961
  %v977 = vpack.c.b16 %v964, %v963
  %v978 = vpack.c.b16 %v966, %v965
  %v979 = vpack.c.b16 %v968, %v967
  %v980 = vpack.c.b16 %v970, %v969
  %v981 = vpack.c.b16 %v972, %v971
  %v982 = vpack.c.b16 %v974, %v973
  %991 = vmatpush.bf16.msra.mxu0 %v982
  %992 = vmatpush.bf16.msra.mxu0 %v981
  %993 = vmatpush.bf16.msra.mxu0 %v980
  %994 = vmatpush.bf16.msra.mxu0 %v979
  %995 = vmatpush.bf16.msra.mxu0 %v978
  %996 = vmatpush.bf16.msra.mxu0 %v977
  %997 = vmatpush.bf16.msra.mxu0 %v976
  %998 = vmatpush.bf16.msra.mxu0 %v975
  %999 = vmatmul.bf16.gmra.mxu0 %v915
  %v1000 = vpop.f32.mrf.mxu0
  %v1001 = vadd.f32 %v941, %v1000
  %v1002 = vpop.f32.mrf.mxu0
  %v1003 = vadd.f32 %v941, %v1002
  %1004 = vmatmul.bf16.gmra.mxu0 %v916
  %v1005 = vpop.f32.mrf.mxu0
  %v1006 = vadd.f32 %v941, %v1005
  %v1007 = vpop.f32.mrf.mxu0
  %v1008 = vadd.f32 %v941, %v1007
  %1009 = vmatmul.bf16.gmra.mxu0 %v917
  %v1010 = vpop.f32.mrf.mxu0
  %v1011 = vadd.f32 %v941, %v1010
  %v1012 = vpop.f32.mrf.mxu0
  %v1013 = vadd.f32 %v941, %v1012
  %1014 = vmatmul.bf16.gmra.mxu0 %v918
  %v1015 = vpop.f32.mrf.mxu0
  %v1016 = vadd.f32 %v941, %v1015
  %v1017 = vpop.f32.mrf.mxu0
  %v1018 = vadd.f32 %v941, %v1017
  %1019 = vmatmul.bf16.gmra.mxu0 %v919
  %v1020 = vpop.f32.mrf.mxu0
  %v1021 = vadd.f32 %v941, %v1020
  %v1022 = vpop.f32.mrf.mxu0
  %v1023 = vadd.f32 %v941, %v1022
  %1024 = vmatmul.bf16.gmra.mxu0 %v920
  %v1025 = vpop.f32.mrf.mxu0
  %v1026 = vadd.f32 %v941, %v1025
  %v1027 = vpop.f32.mrf.mxu0
  %v1028 = vadd.f32 %v941, %v1027
  %1029 = vmatmul.bf16.gmra.mxu0 %v921
  %v1030 = vpop.f32.mrf.mxu0
  %v1031 = vadd.f32 %v941, %v1030
  %v1032 = vpop.f32.mrf.mxu0
  %v1033 = vadd.f32 %v941, %v1032
  %1034 = vmatmul.bf16.gmra.mxu0 %v922
  %v1035 = vpop.f32.mrf.mxu0
  %v1036 = vadd.f32 %v941, %v1035
  %v1037 = vpop.f32.mrf.mxu0
  %v1038 = vadd.f32 %v941, %v1037
  %1039 = vdwg.mxu0
  %vm1040 = vcmask 7168
  %1041 = vst.msk [vmem:[%s11] sm:$0xff] %vm1040, %v1001
  %1042 = vst.msk [vmem:[%s11 + $0x8] sm:$0xff] %vm1040, %v1003
  %1043 = vst.msk [vmem:[%s11 + $0x10] sm:$0xff] %vm1040, %v1006
  %1044 = vst.msk [vmem:[%s11 + $0x18] sm:$0xff] %vm1040, %v1008
  %1045 = vst.msk [vmem:[%s11 + $0x20] sm:$0xff] %vm1040, %v1011
  %1046 = vst.msk [vmem:[%s11 + $0x28] sm:$0xff] %vm1040, %v1013
  %1047 = vst.msk [vmem:[%s11 + $0x30] sm:$0xff] %vm1040, %v1016
  %1048 = vst.msk [vmem:[%s11 + $0x38] sm:$0xff] %vm1040, %v1018
  %1049 = vst.msk [vmem:[%s11 + $0x40] sm:$0xff] %vm1040, %v1021
  %1050 = vst.msk [vmem:[%s11 + $0x48] sm:$0xff] %vm1040, %v1023
  %1051 = vst.msk [vmem:[%s11 + $0x50] sm:$0xff] %vm1040, %v1026
  %1052 = vst.msk [vmem:[%s11 + $0x58] sm:$0xff] %vm1040, %v1028
  %1053 = vst.msk [vmem:[%s11 + $0x60] sm:$0xff] %vm1040, %v1031
  %1054 = vst.msk [vmem:[%s11 + $0x68] sm:$0xff] %vm1040, %v1033
  %1055 = vst.msk [vmem:[%s11 + $0x70] sm:$0xff] %vm1040, %v1036
  %1056 = vst.msk [vmem:[%s11 + $0x78] sm:$0xff] %vm1040, %v1038
  // Predicated region
  $region46: #{mlp_forward.1} parent=0 // pred_check
    _
  $region47: #{mlp_forward.1} parent=0 // pred_check_branch
    %1058 = sbr.rel (0) target = $region49
  $region48: #{mlp_forward.1} parent=0 // pred_region
    _
  $region49: #{mlp_forward.1} parent=0 // pred_fallthru
    _
  // Predicated region
  $region50: #{mlp_forward.1} parent=0 // pred_check
    _
  $region51: #{mlp_forward.1} parent=0 // pred_check_branch
    %1060 = sbr.rel (0) target = $region53
  $region52: #{mlp_forward.1} parent=0 // pred_region
    _
  $region53: #{mlp_forward.1} parent=0 // pred_fallthru
    _

</llo_original>
